<compile_context>
chip_gen: v5e
topology: v5e:2x2
jax: 0.10.0
libtpu: 0.0.40
codegen_flags: <defaults>
</compile_context>

<pallas_src>
import functools

import jax
import jax.numpy as jnp
from jax.experimental import pallas as pl
from jax.experimental.pallas import tpu as pltpu


def _make_signed_split_kernel(do_expand: bool):
    """Fused signed-split dump kernel.

    One grid step processes a block of TC channels:
      x_ref   : (TC, HW)    float32   input channels (rows = channels)
      out_ref : (TC, 3*HW)  uint8     per-channel [neg | pos | zero] planes,
                                      clamped to [0, 255] and cast
                                      (== cast_for_dump of the NCHW dump)
    """

    def kernel(x_ref, out_ref):
        x = x_ref[...]
        neg = jnp.maximum(-x, 0.0)   # relu(-x)
        pos = jnp.maximum(x, 0.0)    # relu(x)

        if do_expand:
            # expand(): (t - min) / (max - min) * 255 over the 3-plane stack
            # of each channel.  min of {relu(-x), relu(x), 0} is always 0;
            # max is max(|x|).  Per-row reduction (each row is an independent
            # channel) -- never a block-global max.
            m = jnp.max(jnp.maximum(neg, pos), axis=-1, keepdims=True)  # (TC,1)
            # Guard all-zero channels: PyTorch produces NaN planes there and
            # NaN->uint8 is implementation-defined; map them to 0 instead.
            scale = jnp.where(
                m > 0.0, 255.0 * pl.reciprocal(m, approx=True), 0.0)
            neg = neg * scale
            pos = pos * scale

        # cast_for_dump: clamp(0, 255) then uint8; values are already >= 0.
        planes = jnp.concatenate(
            [jnp.minimum(neg, 255.0),
             jnp.minimum(pos, 255.0),
             jnp.zeros_like(x)],
            axis=-1)                          # (TC, 3*HW) f32, lane-dense
        out_ref[...] = planes.astype(jnp.uint8)

    return kernel


def _choose_block_channels(C, HW):
    """Channels per grid step (sublane extent of the block)."""
    if C <= 32:
        # Full extent is always a legal block (second-to-last dim == array dim).
        return C
    # Multiple of 32 (uint8 sublane tile), sized so the double-buffered
    # working set (~2 * (4 B in + 3 B out) * TC * HW ~= 14 B/elem) stays a few
    # MiB (fits v5e's 16 MiB scoped VMEM, well under v7x's 32 MiB), and split
    # into >= 2 grid steps so v7x's two TensorCores both get work.
    budget_rows = max(32, (4 * 1024 * 1024) // (14 * HW))
    tc = min(budget_rows, pl.cdiv(C, 2))
    return max(32, (tc // 32) * 32)


@functools.partial(jax.jit, static_argnames=("do_expand",))
def signed_split_dump(features, do_expand=False):
    """Pallas implementation of FeaturesDumper.__signed_split_dump + cast_for_dump.

    features: (C, H, W) float32 (channels_dim=0, unsqueeze_dim=0)
    returns : (C, 3, H, W) uint8  -- what writer.add_images receives (NCHW)
    """
    C, H, W = features.shape
    HW = H * W
    xf = features.reshape(C, HW).astype(jnp.float32)

    TC = _choose_block_channels(C, HW)
    grid = (pl.cdiv(C, TC),)

    out = pl.pallas_call(
        _make_signed_split_kernel(do_expand),
        grid=grid,
        in_specs=[pl.BlockSpec((TC, HW), lambda i: (i, 0))],
        out_specs=pl.BlockSpec((TC, 3 * HW), lambda i: (i, 0)),
        out_shape=jax.ShapeDtypeStruct((C, 3 * HW), jnp.uint8),
        compiler_params=pltpu.CompilerParams(
            dimension_semantics=("parallel",)),
    )(xf)

    # (C, 3*HW) -> (C, 3, H, W): contiguous reshape, free (no data movement).
    return out.reshape(C, 3, H, W)


class ListWriter:
    """Tiny stand-in for the tensorboard writer: collects dumps in memory."""

    def __init__(self):
        self.images = []
        self.scalars = []

    def add_images(self, tag, tensors, step, dataformats="NCHW"):
        self.images.append((tag, tensors, step, dataformats))

    def add_scalar(self, tag, value, step):
        self.scalars.append((tag, value, step))


class FeaturesDumper:
    """JAX/Pallas port of the PyTorch FeaturesDumper (signed_split mode)."""

    DEFAULT = {
        "dataformats": "NCHW",
        "mode": "signed_split",
        "unsqueeze_dim": 0,
        "channels_dim": 0,
        "interval": 1,
        "expand": False,
    }

    def __init__(self, config, writer):
        cfg = dict(self.DEFAULT)
        cfg.update(config)
        self.config = cfg
        self.writer = writer
        self._last_dump_interval = cfg["interval"] - 1
        self._iterations = 0
        if cfg["mode"] != "signed_split":
            # TODO(synk): 'split' / 'rgb' modes are pure reshape+clamp+cast
            # (no interesting hot path); only the default 'signed_split' mode
            # is kernelized here.
            raise NotImplementedError("only mode='signed_split' is implemented")

    def __call__(self, features):
        return self.forward(features)

    def forward(self, features):
        self._iterations += 1
        self._last_dump_interval += 1
        if self._last_dump_interval == self.config["interval"]:
            dump = signed_split_dump(features, do_expand=self.config["expand"])
            self.writer.add_images(
                self.config["tag"],
                jax.device_get(dump),  # "cpu().numpy()"
                self._iterations,
                dataformats=self.config["dataformats"],
            )
            self._last_dump_interval = 0
        return features  # forward is an identity on its input


def _reference_signed_split(features, do_expand=False):
    """Pure-JAX reference for correctness checking."""
    neg = jnp.maximum(-features, 0.0)
    pos = jnp.maximum(features, 0.0)
    zero = jnp.zeros_like(features)
    planes = jnp.stack([neg, pos, zero], axis=1)          # (C, 3, H, W)
    if do_expand:
        mx = jnp.max(planes, axis=(1, 2, 3), keepdims=True)
        mn = jnp.min(planes, axis=(1, 2, 3), keepdims=True)  # always 0 here
        scale = jnp.where(mx > mn, 255.0 / (mx - mn), 0.0)
        planes = (planes - mn) * scale
    return jnp.clip(planes, 0.0, 255.0).astype(jnp.uint8)


if __name__ == "__main__":
    key = jax.random.PRNGKey(0)
    C, H, W = 4, 16, 16
    # Values spanning negative and positive, some beyond 255 to exercise clamp.
    features = 300.0 * jax.random.normal(key, (C, H, W), dtype=jnp.float32)

    writer = ListWriter()
    dumper = FeaturesDumper({"tag": "feat"}, writer)

    out = dumper(features)
    out = jax.block_until_ready(out)

    # forward is identity
    assert out.shape == features.shape and out.dtype == features.dtype
    assert bool(jnp.all(out == features))

    # one dump happened (interval=1), shape (C, 3, H, W) uint8, matches ref
    assert len(writer.images) == 1
    tag, dump_np, step, fmt = writer.images[0]
    assert dump_np.shape == (C, 3, H, W) and dump_np.dtype.name == "uint8"
    ref = jax.device_get(_reference_signed_split(features, do_expand=False))
    assert (dump_np == ref).all()

    # Also exercise the expand=True path.  approx reciprocal may shift a value
    # across a uint8 truncation boundary, so allow +-1.
    dump_e = jax.block_until_ready(signed_split_dump(features, do_expand=True))
    ref_e = _reference_signed_split(features, do_expand=True)
    diff = jnp.abs(dump_e.astype(jnp.int32) - ref_e.astype(jnp.int32))
    assert int(jnp.max(diff)) <= 1

    print("KERNEL_OK")
</pallas_src>

<mosaic_0001>
module attributes {stable_mosaic.version = 11 : i64} {
  func.func @kernel(%arg0: i32, %arg1: memref<4x256xf32, #tpu.memory_space<vmem>>, %arg2: memref<4x768xi8, #tpu.memory_space<vmem>>) attributes {dimension_semantics = [#tpu.dimension_semantics<parallel>], iteration_bounds = array<i64: 1>, scalar_prefetch = 0 : i64, scratch_operands = 0 : i64, tpu.core_type = #tpu.core_type<tc>, window_params = [{transform_indices = @transform_0, window_bounds = array<i64: 4, 256>}, {transform_indices = @transform_1, window_bounds = array<i64: 4, 768>}]} {
    %c0 = arith.constant 0 : index
    %c0_0 = arith.constant 0 : index
    %0 = vector.load %arg1[%c0, %c0_0] : memref<4x256xf32, #tpu.memory_space<vmem>>, vector<4x256xf32>
    %cst = arith.constant 0.000000e+00 : f32
    %1 = vector.broadcast %cst : f32 to vector<4x256xf32>
    %2 = arith.subf %1, %0 : vector<4x256xf32>
    %cst_1 = arith.constant 0.000000e+00 : f32
    %3 = vector.broadcast %cst_1 : f32 to vector<4x256xf32>
    %4 = arith.maximumf %2, %3 : vector<4x256xf32>
    %cst_2 = arith.constant 0.000000e+00 : f32
    %5 = vector.broadcast %cst_2 : f32 to vector<4x256xf32>
    %6 = arith.maximumf %0, %5 : vector<4x256xf32>
    %cst_3 = arith.constant 2.550000e+02 : f32
    %7 = vector.broadcast %cst_3 : f32 to vector<4x256xf32>
    %8 = arith.minimumf %4, %7 : vector<4x256xf32>
    %cst_4 = arith.constant 2.550000e+02 : f32
    %9 = vector.broadcast %cst_4 : f32 to vector<4x256xf32>
    %10 = arith.minimumf %6, %9 : vector<4x256xf32>
    %cst_5 = arith.constant 0.000000e+00 : f32
    %11 = vector.broadcast %cst_5 : f32 to vector<4x256xf32>
    %12 = tpu.concatenate %8, %10, %11 in 1 : vector<4x256xf32>, vector<4x256xf32>, vector<4x256xf32> -> vector<4x768xf32>
    %13 = arith.fptoui %12 : vector<4x768xf32> to vector<4x768xi8>
    %c0_6 = arith.constant 0 : index
    %c0_7 = arith.constant 0 : index
    %14 = vector.load %arg2[%c0_6, %c0_7] : memref<4x768xi8, #tpu.memory_space<vmem>>, vector<4x768xi8>
    tpu.vector_store %arg2[%c0_6, %c0_7], %13 {strides = array<i32>} : memref<4x768xi8, #tpu.memory_space<vmem>>, vector<4x768xi8>,
    return
  }
  func.func @transform_0(%arg0: i32) -> (i32, i32) {
    %c0_i32 = arith.constant 0 : i32
    %c0_i32_0 = arith.constant 0 : i32
    return %arg0, %c0_i32 : i32, i32
  }
  func.func @transform_1(%arg0: i32) -> (i32, i32) {
    %c0_i32 = arith.constant 0 : i32
    %c0_i32_0 = arith.constant 0 : i32
    return %arg0, %c0_i32 : i32, i32
  }
}

</mosaic_0001>

<llo_original>
// kernel: signed_split_dump.1
$region0: #{signed_split_dump.1}
  #allocation0 [shape = 'u32[]', space=smem, size = 0x4, offset = 0x4, fixed_abs, tag = 'smem constant byte address 0x4 - core index']
  #allocation1 [shape = 'u32[72,128]{1,0:T(1,128)}', space=vmem, size = 0x9000, scoped, tag = 'internal scratch']
  %s0 = inlined_call_operand.vmem [shape: f32[4,256], index: 0, kind: input, shape index: {}]
  %s1 = inlined_call_operand.vmem [shape: u8[4,768], index: 1, kind: output, shape index: {}]
  %s2 = sld [smem:[#allocation0]]
  $region14: #{signed_split_dump.1} parent=0
    _
  %s4 = ssub.s32 1, %s2
  %s5 = scalar_select 0, %s4, %s2
  // Predicated region
  $region2: #{signed_split_dump.1} parent=0 // pred_check
    _
  $region3: #{signed_split_dump.1} parent=0 // pred_check_branch
    %7 = sbr.rel (0) target = $region5
  $region4: #{signed_split_dump.1} parent=0 // pred_region
    _
  $region5: #{signed_split_dump.1} parent=0 // pred_fallthru
    _
  %v8 = vld [vmem:[%s0] sm:$0xff]
  %v9 = vsub.f32 0.0, %v8
  %v10 = vmax.f32 %v9, 0.0
  %v11 = vmax.f32 %v8, 0.0
  %v12 = vmin.f32 %v10, 255.0
  %v13 = vmin.f32 %v11, 255.0
  %15 = vst [vmem:[#allocation1] ss:$2 sm:$0xff] %v12
  %v16 = vld.sshfl [vmem:[#allocation1] sm:$0xff pattern:$0x75316420]
  %v17 = vld.sshfl [vmem:[#allocation1 + $0x8] sm:$0xff pattern:$0x75316420]
  %21 = vst [vmem:[#allocation1] ss:$2 sm:$0xff] %v13
  %v22 = vld.sshfl [vmem:[#allocation1] sm:$0xff pattern:$0x75316420]
  %v23 = vld.sshfl [vmem:[#allocation1 + $0x8] sm:$0xff pattern:$0x75316420]
  %v26 = vmax.f32 %v16, 0.0
  %v27 = vmax.f32 %v17, 0.0
  %v28 = vmax.f32 %v22, 0.0
  %v29 = vmax.f32 %v23, 0.0
  %v30 = vmin.f32 %v26, 255.0
  %v31 = vmin.f32 %v27, 255.0
  %v32 = vmin.f32 %v28, 255.0
  %v33 = vmin.f32 %v29, 255.0
  %v34 = vcvt.f32.s32.to.zero.pseudo %v30
  %v35 = vcvt.f32.s32.to.zero.pseudo %v31
  %v36 = vcvt.f32.s32.to.zero.pseudo %v32
  %v37 = vcvt.f32.s32.to.zero.pseudo %v33
  %v38 = vcvt.f32.s32.to.zero.pseudo 0.0
  %v39 = vpack.c.b16 %v34, %v34
  %v40 = vpack.c.b8 %v39, %v39
  %v41 = vpack.c.b16 %v35, %v35
  %v42 = vpack.c.b8 %v41, %v41
  %v43 = vpack.c.b16 %v36, %v36
  %v44 = vpack.c.b8 %v43, %v43
  %v45 = vpack.c.b16 %v37, %v37
  %v46 = vpack.c.b8 %v45, %v45
  %v47 = vpack.c.b16 %v38, %v38
  %v48 = vpack.c.b8 %v47, %v47
  %v49 = vrot.slane %v42, 7
  %v50 = vrot.slane %v44, 6
  %v51 = vrot.slane %v46, 5
  %v52 = vrot.slane %v48, 4
  %v53 = vrot.slane %v48, 3
  %vm54 = vcmask 1040384
  %v57 = vsel %vm54, %v40, %v49
  %vm58 = vcmask 1041408
  %v60 = vsel %vm58, %v57, %v50
  %vm61 = vcmask 1043459
  %v64 = vsel %vm61, %v51, %v52
  %vm65 = vcmask 1044483
  %v67 = vsel %vm65, %v64, %v53
  %vm68 = vcmask 1042432
  %v69 = vsel %vm68, %v60, %v67
  %71 = vst [vmem:[%s1] sm:$0x3f] %v69
  // Predicated region
  $region6: #{signed_split_dump.1} parent=0 // pred_check
    _
  $region7: #{signed_split_dump.1} parent=0 // pred_check_branch
    %73 = sbr.rel (0) target = $region9
  $region8: #{signed_split_dump.1} parent=0 // pred_region
    _
  $region9: #{signed_split_dump.1} parent=0 // pred_fallthru
    _
  // Predicated region
  $region10: #{signed_split_dump.1} parent=0 // pred_check
    _
  $region11: #{signed_split_dump.1} parent=0 // pred_check_branch
    %75 = sbr.rel (0) target = $region13
  $region12: #{signed_split_dump.1} parent=0 // pred_region
    _
  $region13: #{signed_split_dump.1} parent=0 // pred_fallthru
    _

</llo_original>
